<compile_context>
chip_gen: v7x
topology: tpu7x:2x2x1
jax: 0.10.0
libtpu: 0.0.40
codegen_flags: <defaults>
</compile_context>

<pallas_src>
import functools

import jax
import jax.numpy as jnp
from jax import lax
from jax.experimental import pallas as pl
from jax.experimental.pallas import tpu as pltpu


# -----------------------------------------------------------------------------
# In-kernel helpers
# -----------------------------------------------------------------------------
def _silu(x):
    # x * sigmoid(x) with sigmoid(x) = 0.5*(1 + tanh(0.5*x)):
    # one EUP transcendental per element instead of exp + reciprocal.
    return 0.5 * x * (1.0 + jnp.tanh(0.5 * x))


# -----------------------------------------------------------------------------
# Kernel
# -----------------------------------------------------------------------------
def temporal_block_kernel(x_ref, w1_ref, b1_ref, w2_ref, b2_ref, out_ref,
                          *, kernel_size, dilation, seq_len, n_outputs):
    """One grid step processes a (C_in, N) slab of N = TB*L packed lanes.

    Stage s computes y = W_s @ slab_s + b_s on the MXU, where slab_s stacks the
    K masked causal shifts of the stage input along the sublane axis and W_s
    folds {depthwise taps, pointwise 1x1, BN affine, biases}.  Stage 1
    additionally carries the residual 1x1 (downsample) on extra output rows.
    Dropout is identity (eval).
    """
    x = x_ref[...].astype(jnp.float32)                      # (C_in, N)
    n = x.shape[1]

    # Within-sequence position (t mod L): masks zero the roll wrap-around
    # across packed sequence boundaries (i.e. the causal left padding).
    # Hoisted once and shared by both stages.
    t = lax.broadcasted_iota(jnp.int32, (1, n), 1)
    if (seq_len & (seq_len - 1)) == 0:                      # power-of-two fast path
        pos = t & (seq_len - 1)
    else:
        pos = t % seq_len
    masks = [(pos >= (kernel_size - 1 - k) * dilation).astype(jnp.float32)
             for k in range(kernel_size - 1)]

    def tap_stack(h):
        # (K*C, N) slab: tap k is h shifted right by (K-1-k)*dilation with the
        # cross-sequence prefix zeroed; tap K-1 is the unshifted input.
        taps = []
        for k in range(kernel_size - 1):
            shift = (kernel_size - 1 - k) * dilation
            taps.append(pltpu.roll(h, shift, 1) * masks[k])  # roll on XLU
        taps.append(h)
        return jnp.concatenate(taps, axis=0)

    # ---- stage 1 (+ residual rows) in one MXU matmul ------------------------
    y1 = jnp.dot(w1_ref[...], tap_stack(x),
                 preferred_element_type=jnp.float32) + b1_ref[...]
    h1 = _silu(y1[:n_outputs, :])                           # dropout1 -> identity
    res = y1[n_outputs:, :]                                 # downsample(x) (+ bias)

    # ---- stage 2 -------------------------------------------------------------
    y2 = jnp.dot(w2_ref[...], tap_stack(h1),
                 preferred_element_type=jnp.float32) + b2_ref[...]
    out = _silu(y2) + res                                   # dropout2 -> identity
    out_ref[...] = out.astype(out_ref.dtype)


# -----------------------------------------------------------------------------
# Parameter folding (once, outside the kernel)
# -----------------------------------------------------------------------------
def fold_params(p, *, kernel_size):
    """Fold BN affine, depthwise biases/taps and the residual 1x1 into two
    fused MXU weight matrices plus bias columns."""
    K = kernel_size
    C_out, C_in = p["wpw1"].shape
    f32 = jnp.float32

    bn1s, bn1b = p["bn1s"].astype(f32), p["bn1b"].astype(f32)
    bn2s, bn2b = p["bn2s"].astype(f32), p["bn2b"].astype(f32)

    wpw1f = bn1s * p["wpw1"]
    bpw1f = bn1s * (p["wpw1"] @ p["bdw1"] + p["bpw1"]) + bn1b
    wpw2f = bn2s * p["wpw2"]
    bpw2f = bn2s * (p["wpw2"] @ p["bdw2"] + p["bpw2"]) + bn2b

    # Fused weight: W[o, k*C + c] = W_pw[o, c] * w_dw[k, c]
    w1_taps = (wpw1f[:, None, :] * p["wdw1"][None, :, :, 0]).reshape(C_out, K * C_in)
    w2_taps = (wpw2f[:, None, :] * p["wdw2"][None, :, :, 0]).reshape(C_out, K * C_out)

    if p.get("wds") is None:            # n_inputs == n_outputs -> identity residual
        wds = jnp.eye(C_out, dtype=f32)
        bds = jnp.zeros((C_out, 1), f32)
    else:
        wds, bds = p["wds"].astype(f32), p["bds"].astype(f32)

    # Residual 1x1 rides on the shift-0 (k = K-1) tap block of stage 1.
    w1 = jnp.zeros((2 * C_out, K * C_in), f32)
    w1 = w1.at[:C_out, :].set(w1_taps)
    w1 = w1.at[C_out:, (K - 1) * C_in:].set(wds)
    b1 = jnp.concatenate([bpw1f, bds], axis=0).astype(f32)
    return w1, b1, w2_taps.astype(f32), bpw2f.astype(f32)


# -----------------------------------------------------------------------------
# Tiling / VMEM budgeting
# -----------------------------------------------------------------------------
def _vmem_bytes(n, *, C_in, C_out, K, io_bytes):
    dbuf = 2 * n * (C_in + C_out) * io_bytes                    # double-buffered I/O
    live = 4 * n * (K * C_in + K * C_out + C_in + 3 * C_out)    # f32 intermediates
    params = 2 * 4 * (2 * C_out * K * C_in + C_out * K * C_out + 3 * C_out)
    return dbuf + live + params


def _pick_batch_tile(B, L, *, target_lanes, vmem_budget, C_in, C_out, K, io_bytes):
    candidates = []
    for tb in range(1, B + 1):
        if B % tb:
            continue
        n, nb = tb * L, B // tb
        if B >= 2 and nb < 2:
            continue          # keep >=2 grid steps: v7x megacore + DMA pipelining
        if nb > 1 and n % 128:
            continue          # lane-dense stores / (8,128) BlockSpec rule
        if _vmem_bytes(n, C_in=C_in, C_out=C_out, K=K, io_bytes=io_bytes) > vmem_budget:
            continue
        candidates.append(tb)
    if not candidates:
        return B              # fall back to a single full-extent block
    within = [tb for tb in candidates if tb * L <= target_lanes]
    return max(within) if within else min(candidates)


# -----------------------------------------------------------------------------
# Wrappers
# -----------------------------------------------------------------------------
def lightweight_temporal_block_packed(x_cl, folded, *, kernel_size, dilation,
                                      batch, seq_len, out_dtype=None,
                                      batch_tile=None, target_lanes=2048,
                                      vmem_budget=12 << 20):
    """Fused block on the packed (C_in, B*L) layout.  Chain these directly for
    stacked temporal blocks; transpose only at model boundaries."""
    w1, b1, w2, b2 = folded
    C_in = x_cl.shape[0]
    C_out = w2.shape[0]
    K = kernel_size
    io_bytes = jnp.dtype(x_cl.dtype).itemsize
    out_dtype = x_cl.dtype if out_dtype is None else out_dtype

    if batch_tile is None:
        TB = _pick_batch_tile(batch, seq_len, target_lanes=target_lanes,
                              vmem_budget=vmem_budget, C_in=C_in, C_out=C_out,
                              K=K, io_bytes=io_bytes)
    else:
        TB = batch_tile
    assert batch % TB == 0, "batch must divide evenly into batch tiles"
    n_blocks = batch // TB
    N = TB * seq_len

    est = _vmem_bytes(N, C_in=C_in, C_out=C_out, K=K, io_bytes=io_bytes)
    vmem_limit = None if est <= (12 << 20) else min(2 * est, 48 << 20)

    kernel = functools.partial(
        temporal_block_kernel, kernel_size=K, dilation=dilation,
        seq_len=seq_len, n_outputs=C_out)

    def rep(shape):
        # parameter broadcast: same full-array block at every grid step
        return pl.BlockSpec(shape, lambda b: (0,) * len(shape))

    return pl.pallas_call(
        kernel,
        out_shape=jax.ShapeDtypeStruct((C_out, batch * seq_len), out_dtype),
        grid=(n_blocks,),
        in_specs=[
            pl.BlockSpec((C_in, N), lambda b: (0, b)),     # activation slab
            rep(w1.shape), rep(b1.shape),                  # stage 1 (+ residual)
            rep(w2.shape), rep(b2.shape),                  # stage 2
        ],
        out_specs=pl.BlockSpec((C_out, N), lambda b: (0, b)),
        compiler_params=pltpu.CompilerParams(
            dimension_semantics=("parallel",),
            vmem_limit_bytes=vmem_limit),
    )(x_cl, w1, b1, w2, b2)


def lightweight_temporal_block(x, p, *, kernel_size, dilation,
                               io_dtype=jnp.bfloat16, out_dtype=None, **kw):
    """NCL convenience wrapper.  x: (B, C_in, L) -> (B, C_out, L).

    For stacked blocks prefer lightweight_temporal_block_packed to keep the
    (C, B*L) layout across blocks and avoid HBM transpose round-trips.
    """
    B, C_in, L = x.shape
    folded = fold_params(p, kernel_size=kernel_size)
    C_out = folded[3].shape[0]
    # NCL -> (C, B*L): channels on sublanes, (batch, time) flattened on lanes.
    x_cl = jnp.transpose(x, (1, 0, 2)).reshape(C_in, B * L).astype(io_dtype)
    out_cl = lightweight_temporal_block_packed(
        x_cl, folded, kernel_size=kernel_size, dilation=dilation,
        batch=B, seq_len=L, out_dtype=out_dtype, **kw)
    return jnp.transpose(out_cl.reshape(C_out, B, L), (1, 0, 2))


# -----------------------------------------------------------------------------
# Pure-JAX reference (mirrors the PyTorch forward, eval mode)
# -----------------------------------------------------------------------------
def reference_forward(x, p, *, kernel_size, dilation):
    K, d = kernel_size, dilation
    pad = (K - 1) * d

    def dw(h, w, b):
        B, C, L = h.shape
        hp = jnp.pad(h, ((0, 0), (0, 0), (pad, 0)))
        out = jnp.zeros((B, C, L), jnp.float32)
        for k in range(K):
            out = out + hp[:, :, k * d:k * d + L] * w[k][None]
        return out + b[None]

    h = dw(x, p["wdw1"], p["bdw1"])
    h = jnp.einsum("oi,bil->bol", p["wpw1"], h) + p["bpw1"][None]
    h = jax.nn.silu(p["bn1s"][None] * h + p["bn1b"][None])
    h = dw(h, p["wdw2"], p["bdw2"])
    h = jnp.einsum("oi,bil->bol", p["wpw2"], h) + p["bpw2"][None]
    h = jax.nn.silu(p["bn2s"][None] * h + p["bn2b"][None])
    identity = jnp.einsum("oi,bil->bol", p["wds"], x) + p["bds"][None]
    return h + identity


# -----------------------------------------------------------------------------
# Main
# -----------------------------------------------------------------------------
if __name__ == "__main__":
    B, C_in, C_out, L = 2, 8, 16, 128
    K, dilation = 3, 2                       # stride assumed 1 (TCN-style)
    eps = 1e-5

    key = jax.random.PRNGKey(0)
    ks = jax.random.split(key, 20)

    def nrm(k, shape, scale):
        return (jax.random.normal(k, shape, jnp.float32) * scale).astype(jnp.float32)

    # BatchNorm folded to affine (inference): scale = gamma/sqrt(var+eps),
    # shift = beta - mean*scale
    def make_bn(kg, kb, km, kv, c):
        gamma = 1.0 + 0.1 * jax.random.normal(kg, (c, 1), jnp.float32)
        beta = 0.1 * jax.random.normal(kb, (c, 1), jnp.float32)
        mean = 0.1 * jax.random.normal(km, (c, 1), jnp.float32)
        var = 1.0 + 0.1 * jax.random.uniform(kv, (c, 1), jnp.float32)
        scale = gamma / jnp.sqrt(var + eps)
        shift = beta - mean * scale
        return scale, shift

    bn1s, bn1b = make_bn(ks[10], ks[11], ks[12], ks[13], C_out)
    bn2s, bn2b = make_bn(ks[14], ks[15], ks[16], ks[17], C_out)

    params = {
        "wdw1": nrm(ks[0], (K, C_in, 1), (2.0 / K) ** 0.5),
        "bdw1": nrm(ks[1], (C_in, 1), 0.1),
        "wpw1": nrm(ks[2], (C_out, C_in), (1.0 / C_in) ** 0.5),
        "bpw1": nrm(ks[3], (C_out, 1), 0.1),
        "bn1s": bn1s, "bn1b": bn1b,
        "wdw2": nrm(ks[4], (K, C_out, 1), (2.0 / K) ** 0.5),
        "bdw2": nrm(ks[5], (C_out, 1), 0.1),
        "wpw2": nrm(ks[6], (C_out, C_out), (1.0 / C_out) ** 0.5),
        "bpw2": nrm(ks[7], (C_out, 1), 0.1),
        "bn2s": bn2s, "bn2b": bn2b,
        # downsample 1x1 conv (n_inputs != n_outputs); identity otherwise
        "wds": nrm(ks[8], (C_out, C_in), (1.0 / C_in) ** 0.5),
        "bds": nrm(ks[9], (C_out, 1), 0.1),
    }

    x = jax.random.normal(ks[18], (B, C_in, L), jnp.float32)

    out = lightweight_temporal_block(x, params, kernel_size=K, dilation=dilation)
    out = jax.block_until_ready(out)
    assert out.shape == (B, C_out, L)

    # Reference uses the same bf16-quantized input the kernel sees; remaining
    # deltas are bf16 output rounding and matmul summation order.
    xq = x.astype(jnp.bfloat16).astype(jnp.float32)
    ref = reference_forward(xq, params, kernel_size=K, dilation=dilation)
    err = float(jnp.max(jnp.abs(out.astype(jnp.float32) - ref)))
    assert jnp.allclose(out.astype(jnp.float32), ref, atol=5e-2, rtol=2e-2), err

    print("KERNEL_OK")
</pallas_src>

<mosaic_0001>
module attributes {stable_mosaic.version = 11 : i64} {
  func.func @temporal_block_kernel(%arg0: i32, %arg1: memref<8x128xbf16, #tpu.memory_space<vmem>>, %arg2: memref<32x24xf32, #tpu.memory_space<vmem>>, %arg3: memref<32x1xf32, #tpu.memory_space<vmem>>, %arg4: memref<16x48xf32, #tpu.memory_space<vmem>>, %arg5: memref<16x1xf32, #tpu.memory_space<vmem>>, %arg6: memref<16x128xbf16, #tpu.memory_space<vmem>>) attributes {dimension_semantics = [#tpu.dimension_semantics<parallel>], iteration_bounds = array<i64: 2>, scalar_prefetch = 0 : i64, scratch_operands = 0 : i64, tpu.core_type = #tpu.core_type<tc>, window_params = [{transform_indices = @transform_0, window_bounds = array<i64: 8, 128>}, {pipeline_mode = #tpu.pipeline_mode<synchronous>, transform_indices = @transform_1, window_bounds = array<i64: 32, 24>}, {pipeline_mode = #tpu.pipeline_mode<synchronous>, transform_indices = @transform_2, window_bounds = array<i64: 32, 1>}, {pipeline_mode = #tpu.pipeline_mode<synchronous>, transform_indices = @transform_3, window_bounds = array<i64: 16, 48>}, {pipeline_mode = #tpu.pipeline_mode<synchronous>, transform_indices = @transform_4, window_bounds = array<i64: 16, 1>}, {transform_indices = @transform_5, window_bounds = array<i64: 16, 128>}]} {
    %c0 = arith.constant 0 : index
    %c0_0 = arith.constant 0 : index
    %0 = vector.load %arg1[%c0, %c0_0] : memref<8x128xbf16, #tpu.memory_space<vmem>>, vector<8x128xbf16>
    %1 = arith.extf %0 : vector<8x128xbf16> to vector<8x128xf32>
    %2 = tpu.iota {dimensions = array<i32: 1>} : vector<1x128xi32>
    %c127_i32 = arith.constant 127 : i32
    %3 = vector.broadcast %c127_i32 : i32 to vector<1x128xi32>
    %4 = arith.andi %2, %3 : vector<1x128xi32>
    %c4_i32 = arith.constant 4 : i32
    %5 = vector.broadcast %c4_i32 : i32 to vector<1x128xi32>
    %6 = arith.cmpi sge, %4, %5 : vector<1x128xi32>
    %7 = arith.extui %6 : vector<1x128xi1> to vector<1x128xi32>
    %8 = arith.sitofp %7 : vector<1x128xi32> to vector<1x128xf32>
    %c2_i32 = arith.constant 2 : i32
    %9 = vector.broadcast %c2_i32 : i32 to vector<1x128xi32>
    %10 = arith.cmpi sge, %4, %9 : vector<1x128xi32>
    %11 = arith.extui %10 : vector<1x128xi1> to vector<1x128xi32>
    %12 = arith.sitofp %11 : vector<1x128xi32> to vector<1x128xf32>
    %c0_1 = arith.constant 0 : index
    %c0_2 = arith.constant 0 : index
    %13 = vector.load %arg2[%c0_1, %c0_2] : memref<32x24xf32, #tpu.memory_space<vmem>>, vector<32x24xf32>
    %c4_i32_3 = arith.constant 4 : i32
    %14 = tpu.dynamic_rotate %1 by %c4_i32_3 dim 1 : vector<8x128xf32>, i32 -> vector<8x128xf32>
    %15 = vector.broadcast %8 : vector<1x128xf32> to vector<8x128xf32>
    %16 = arith.mulf %14, %15 : vector<8x128xf32>
    %c2_i32_4 = arith.constant 2 : i32
    %17 = tpu.dynamic_rotate %1 by %c2_i32_4 dim 1 : vector<8x128xf32>, i32 -> vector<8x128xf32>
    %18 = vector.broadcast %12 : vector<1x128xf32> to vector<8x128xf32>
    %19 = arith.mulf %17, %18 : vector<8x128xf32>
    %20 = tpu.concatenate %16, %19, %1 in 0 : vector<8x128xf32>, vector<8x128xf32>, vector<8x128xf32> -> vector<24x128xf32>
    %cst = arith.constant dense<0.000000e+00> : vector<32x128xf32>
    %21 = tpu.matmul %13, %20, %cst {dimension_numbers = #tpu.dot_dimension_numbers<[1], [0], [0], [1], [0, 0, 1, 1], [], []>} : vector<32x24xf32>, vector<24x128xf32>, vector<32x128xf32> -> vector<32x128xf32>
    %c0_5 = arith.constant 0 : index
    %c0_6 = arith.constant 0 : index
    %22 = vector.load %arg3[%c0_5, %c0_6] : memref<32x1xf32, #tpu.memory_space<vmem>>, vector<32x1xf32>
    %23 = vector.broadcast %22 : vector<32x1xf32> to vector<32x128xf32>
    %24 = arith.addf %21, %23 : vector<32x128xf32>
    %25 = vector.extract_strided_slice %24 {offsets = [0, 0], sizes = [16, 128], strides = [1, 1]} : vector<32x128xf32> to vector<16x128xf32>
    %cst_7 = arith.constant 5.000000e-01 : f32
    %26 = vector.broadcast %cst_7 : f32 to vector<16x128xf32>
    %27 = arith.mulf %26, %25 : vector<16x128xf32>
    %cst_8 = arith.constant 5.000000e-01 : f32
    %28 = vector.broadcast %cst_8 : f32 to vector<16x128xf32>
    %29 = arith.mulf %28, %25 : vector<16x128xf32>
    %30 = math.tanh %29 : vector<16x128xf32>
    %cst_9 = arith.constant 1.000000e+00 : f32
    %31 = vector.broadcast %cst_9 : f32 to vector<16x128xf32>
    %32 = arith.addf %31, %30 : vector<16x128xf32>
    %33 = arith.mulf %27, %32 : vector<16x128xf32>
    %34 = vector.extract_strided_slice %24 {offsets = [16, 0], sizes = [16, 128], strides = [1, 1]} : vector<32x128xf32> to vector<16x128xf32>
    %c0_10 = arith.constant 0 : index
    %c0_11 = arith.constant 0 : index
    %35 = vector.load %arg4[%c0_10, %c0_11] : memref<16x48xf32, #tpu.memory_space<vmem>>, vector<16x48xf32>
    %c4_i32_12 = arith.constant 4 : i32
    %36 = tpu.dynamic_rotate %33 by %c4_i32_12 dim 1 : vector<16x128xf32>, i32 -> vector<16x128xf32>
    %37 = vector.broadcast %8 : vector<1x128xf32> to vector<16x128xf32>
    %38 = arith.mulf %36, %37 : vector<16x128xf32>
    %c2_i32_13 = arith.constant 2 : i32
    %39 = tpu.dynamic_rotate %33 by %c2_i32_13 dim 1 : vector<16x128xf32>, i32 -> vector<16x128xf32>
    %40 = vector.broadcast %12 : vector<1x128xf32> to vector<16x128xf32>
    %41 = arith.mulf %39, %40 : vector<16x128xf32>
    %42 = tpu.concatenate %38, %41, %33 in 0 : vector<16x128xf32>, vector<16x128xf32>, vector<16x128xf32> -> vector<48x128xf32>
    %cst_14 = arith.constant dense<0.000000e+00> : vector<16x128xf32>
    %43 = tpu.matmul %35, %42, %cst_14 {dimension_numbers = #tpu.dot_dimension_numbers<[1], [0], [0], [1], [0, 0, 1, 1], [], []>} : vector<16x48xf32>, vector<48x128xf32>, vector<16x128xf32> -> vector<16x128xf32>
    %c0_15 = arith.constant 0 : index
    %c0_16 = arith.constant 0 : index
    %44 = vector.load %arg5[%c0_15, %c0_16] : memref<16x1xf32, #tpu.memory_space<vmem>>, vector<16x1xf32>
    %45 = vector.broadcast %44 : vector<16x1xf32> to vector<16x128xf32>
    %46 = arith.addf %43, %45 : vector<16x128xf32>
    %cst_17 = arith.constant 5.000000e-01 : f32
    %47 = vector.broadcast %cst_17 : f32 to vector<16x128xf32>
    %48 = arith.mulf %47, %46 : vector<16x128xf32>
    %cst_18 = arith.constant 5.000000e-01 : f32
    %49 = vector.broadcast %cst_18 : f32 to vector<16x128xf32>
    %50 = arith.mulf %49, %46 : vector<16x128xf32>
    %51 = math.tanh %50 : vector<16x128xf32>
    %cst_19 = arith.constant 1.000000e+00 : f32
    %52 = vector.broadcast %cst_19 : f32 to vector<16x128xf32>
    %53 = arith.addf %52, %51 : vector<16x128xf32>
    %54 = arith.mulf %48, %53 : vector<16x128xf32>
    %55 = arith.addf %54, %34 : vector<16x128xf32>
    %56 = arith.truncf %55 : vector<16x128xf32> to vector<16x128xbf16>
    %c0_20 = arith.constant 0 : index
    %c0_21 = arith.constant 0 : index
    %57 = vector.load %arg6[%c0_20, %c0_21] : memref<16x128xbf16, #tpu.memory_space<vmem>>, vector<16x128xbf16>
    tpu.vector_store %arg6[%c0_20, %c0_21], %56 {strides = array<i32>} : memref<16x128xbf16, #tpu.memory_space<vmem>>, vector<16x128xbf16>,
    return
  }
  func.func @transform_0(%arg0: i32) -> (i32, i32) {
    %c0_i32 = arith.constant 0 : i32
    %c0_i32_0 = arith.constant 0 : i32
    return %c0_i32, %arg0 : i32, i32
  }
  func.func @transform_1(%arg0: i32) -> (i32, i32) {
    %c0_i32 = arith.constant 0 : i32
    %c0_i32_0 = arith.constant 0 : i32
    %c0_i32_1 = arith.constant 0 : i32
    return %c0_i32, %c0_i32_0 : i32, i32
  }
  func.func @transform_2(%arg0: i32) -> (i32, i32) {
    %c0_i32 = arith.constant 0 : i32
    %c0_i32_0 = arith.constant 0 : i32
    %c0_i32_1 = arith.constant 0 : i32
    return %c0_i32, %c0_i32_0 : i32, i32
  }
  func.func @transform_3(%arg0: i32) -> (i32, i32) {
    %c0_i32 = arith.constant 0 : i32
    %c0_i32_0 = arith.constant 0 : i32
    %c0_i32_1 = arith.constant 0 : i32
    return %c0_i32, %c0_i32_0 : i32, i32
  }
  func.func @transform_4(%arg0: i32) -> (i32, i32) {
    %c0_i32 = arith.constant 0 : i32
    %c0_i32_0 = arith.constant 0 : i32
    %c0_i32_1 = arith.constant 0 : i32
    return %c0_i32, %c0_i32_0 : i32, i32
  }
  func.func @transform_5(%arg0: i32) -> (i32, i32) {
    %c0_i32 = arith.constant 0 : i32
    %c0_i32_0 = arith.constant 0 : i32
    return %c0_i32, %arg0 : i32, i32
  }
}

</mosaic_0001>

<llo_original>
// kernel: tpu_custom_call.1
$region0: #{tpu_custom_call.1}
  #allocation0 [shape = 'u32[]', space=smem, size = 0x4, offset = 0x4, fixed_abs, tag = 'smem constant byte address 0x4 - core index']
  #allocation1 [shape = 'u32[144,128]{1,0:T(1,128)}', space=vmem, size = 0x12000, scoped, tag = 'internal scratch']
  %s0 = inlined_call_operand.vmem [shape: bf16[8,256], index: 0, kind: input, shape index: {}]
  %s1 = inlined_call_operand.vmem [shape: f32[32,24], index: 1, kind: input, shape index: {}]
  %s2 = inlined_call_operand.vmem [shape: f32[32,1], index: 2, kind: input, shape index: {}]
  %s3 = inlined_call_operand.vmem [shape: f32[16,48], index: 3, kind: input, shape index: {}]
  %s4 = inlined_call_operand.vmem [shape: f32[16,1], index: 4, kind: input, shape index: {}]
  %s5 = inlined_call_operand.hbm [shape: bf16[16,256], index: 5, kind: output, shape index: {}]
  %s6 = sld [smem:[#allocation0]]
  $region53: #{tpu_custom_call.1} parent=0
    _
  %s8 = ssub.s32 1, %s6
  %s9 = scalar_select 0, %s8, %s6
  $region1: #{tpu_custom_call.1} parent=0
    #allocation2 [shape = 'u8[8192]{0}', space=vmem, size = 0x2000, scoped, tag = 'output window, operand 0']
    #allocation3 [shape = 's32[2]{0}', space=sflag, size = 0x8, scoped, tag = 'scoped memory for tpu_custom_call.1']
    %10 = vsyncpa [#allocation3], 0
    %s11 = scalar_lea.sflag [#allocation3], 1
    %12 = vsyncpa %s11, 0
    loop: start=0, step=1, limit=4
    $region2: #{tpu_custom_call.1} parent=1 // loop_pre_header
      _
    $region3: #{tpu_custom_call.1} parent=1 // loop_header
      %s14 = sphi 0, %s18
      %p15 = scmp.ge.s32.totalorder %s14, 4
      %s24 = sphi 0, %s26
      %s27 = sphi 0, %s24
      %s28 = sphi 0, %s27
      %s44 = sphi 0, %s28
      %s48 = sphi 0, %s48
      %s50 = sphi 0, %s48
      %s51 = sphi 0, %s50
      %s65 = sphi 0, %s51
      %s69 = sphi 0, %s69
      %s71 = sphi 0, %s69
      %s72 = sphi 0, %s71
      %s86 = sphi 0, %s72
      %s90 = sphi 0, %s90
      %s92 = sphi 0, %s90
      %s93 = sphi 0, %s92
      %s107 = sphi 0, %s93
      %s111 = sphi 0, %s111
      %s113 = sphi 0, %s111
      %s114 = sphi 0, %s113
      %s128 = sphi 0, %s114
      %s134 = sphi 0, %s136
      %s137 = sphi 0, %s134
      %s138 = sphi 0, %s137
      %s154 = sphi 0, %s138
    $region4: #{tpu_custom_call.1} parent=1 // loop_header_branch
      %17 = sbr.rel (%p15) target = $region8
    $region5: #{tpu_custom_call.1} parent=1 // loop_body
      %s19 = ssub.s32 %s14, 1
      %s20 = ssub.s32 %s14, 2
      %s21 = sadd.s32 %s14, 1
      %s22 = ssub.s32 %s14, %s21
      %p23 = scmp.eq.s32.totalorder %s22, 0
      %s25 = sadd.s32 %s24, 1
      %s26 = scalar_select %p23, %s24, %s25
      %p29 = pneg %p23
      %p30 = scmp.eq.s32.totalorder %s14, 1
      %p31 = por %p29, %p30
      %p32 = scmp.ne.s32.totalorder %s24, %s27
      %p33 = scmp.eq.s32.totalorder %s14, 0
      %p34 = por %p32, %p33
      %p35 = scmp.ne.s32.totalorder %s24, %s27
      %p36 = scmp.eq.s32.totalorder %s19, 1
      %p37 = por %p35, %p36
      %p38 = scmp.ne.s32.totalorder %s27, %s28
      %p39 = scmp.eq.s32.totalorder %s19, 0
      %p40 = por %p38, %p39
      %p41 = scmp.ne.s32.totalorder %s27, %s28
      %p42 = scmp.eq.s32.totalorder %s20, 1
      %p43 = por %p41, %p42
      %p45 = scmp.ne.s32.totalorder %s28, %s44
      %p46 = scmp.eq.s32.totalorder %s20, 0
      %p47 = por %p45, %p46
      %s49 = sadd.s32 %s48, 1
      %p52 = scmp.eq.s32.totalorder %s14, 1
      %p53 = scmp.ne.s32.totalorder %s48, %s50
      %p54 = scmp.eq.s32.totalorder %s14, 0
      %p55 = por %p53, %p54
      %p56 = scmp.ne.s32.totalorder %s48, %s50
      %p57 = scmp.eq.s32.totalorder %s19, 1
      %p58 = por %p56, %p57
      %p59 = scmp.ne.s32.totalorder %s50, %s51
      %p60 = scmp.eq.s32.totalorder %s19, 0
      %p61 = por %p59, %p60
      %p62 = scmp.ne.s32.totalorder %s50, %s51
      %p63 = scmp.eq.s32.totalorder %s20, 1
      %p64 = por %p62, %p63
      %p66 = scmp.ne.s32.totalorder %s51, %s65
      %p67 = scmp.eq.s32.totalorder %s20, 0
      %p68 = por %p66, %p67
      %s70 = sadd.s32 %s69, 1
      %p73 = scmp.eq.s32.totalorder %s14, 1
      %p74 = scmp.ne.s32.totalorder %s69, %s71
      %p75 = scmp.eq.s32.totalorder %s14, 0
      %p76 = por %p74, %p75
      %p77 = scmp.ne.s32.totalorder %s69, %s71
      %p78 = scmp.eq.s32.totalorder %s19, 1
      %p79 = por %p77, %p78
      %p80 = scmp.ne.s32.totalorder %s71, %s72
      %p81 = scmp.eq.s32.totalorder %s19, 0
      %p82 = por %p80, %p81
      %p83 = scmp.ne.s32.totalorder %s71, %s72
      %p84 = scmp.eq.s32.totalorder %s20, 1
      %p85 = por %p83, %p84
      %p87 = scmp.ne.s32.totalorder %s72, %s86
      %p88 = scmp.eq.s32.totalorder %s20, 0
      %p89 = por %p87, %p88
      %s91 = sadd.s32 %s90, 1
      %p94 = scmp.eq.s32.totalorder %s14, 1
      %p95 = scmp.ne.s32.totalorder %s90, %s92
      %p96 = scmp.eq.s32.totalorder %s14, 0
      %p97 = por %p95, %p96
      %p98 = scmp.ne.s32.totalorder %s90, %s92
      %p99 = scmp.eq.s32.totalorder %s19, 1
      %p100 = por %p98, %p99
      %p101 = scmp.ne.s32.totalorder %s92, %s93
      %p102 = scmp.eq.s32.totalorder %s19, 0
      %p103 = por %p101, %p102
      %p104 = scmp.ne.s32.totalorder %s92, %s93
      %p105 = scmp.eq.s32.totalorder %s20, 1
      %p106 = por %p104, %p105
      %p108 = scmp.ne.s32.totalorder %s93, %s107
      %p109 = scmp.eq.s32.totalorder %s20, 0
      %p110 = por %p108, %p109
      %s112 = sadd.s32 %s111, 1
      %p115 = scmp.eq.s32.totalorder %s14, 1
      %p116 = scmp.ne.s32.totalorder %s111, %s113
      %p117 = scmp.eq.s32.totalorder %s14, 0
      %p118 = por %p116, %p117
      %p119 = scmp.ne.s32.totalorder %s111, %s113
      %p120 = scmp.eq.s32.totalorder %s19, 1
      %p121 = por %p119, %p120
      %p122 = scmp.ne.s32.totalorder %s113, %s114
      %p123 = scmp.eq.s32.totalorder %s19, 0
      %p124 = por %p122, %p123
      %p125 = scmp.ne.s32.totalorder %s113, %s114
      %p126 = scmp.eq.s32.totalorder %s20, 1
      %p127 = por %p125, %p126
      %p129 = scmp.ne.s32.totalorder %s114, %s128
      %p130 = scmp.eq.s32.totalorder %s20, 0
      %p131 = por %p129, %p130
      %s132 = ssub.s32 %s14, %s21
      %p133 = scmp.eq.s32.totalorder %s132, 0
      %s135 = sadd.s32 %s134, 1
      %s136 = scalar_select %p133, %s134, %s135
      %p139 = pneg %p133
      %p140 = scmp.eq.s32.totalorder %s14, 1
      %p141 = por %p139, %p140
      %p142 = scmp.ne.s32.totalorder %s134, %s137
      %p143 = scmp.eq.s32.totalorder %s14, 0
      %p144 = por %p142, %p143
      %p145 = scmp.ne.s32.totalorder %s134, %s137
      %p146 = scmp.eq.s32.totalorder %s19, 1
      %p147 = por %p145, %p146
      %p148 = scmp.ne.s32.totalorder %s137, %s138
      %p149 = scmp.eq.s32.totalorder %s19, 0
      %p150 = por %p148, %p149
      %p151 = scmp.ne.s32.totalorder %s137, %s138
      %p152 = scmp.eq.s32.totalorder %s20, 1
      %p153 = por %p151, %p152
      %p155 = scmp.ne.s32.totalorder %s138, %s154
      %p156 = scmp.eq.s32.totalorder %s20, 0
      %p157 = por %p155, %p156
      %p158 = scmp.le.s32.totalorder 1, %s14
      %p159 = scmp.lt.s32.totalorder %s14, 3
      %p160 = pnand %p158, %p159
      %p161 = pneg %p160
      // Predicated region
      $region9: #{tpu_custom_call.1} parent=5 // pred_check
        _
      $region10: #{tpu_custom_call.1} parent=5 // pred_check_branch
        %163 = sbr.rel (%p160) target = $region12
      $region11: #{tpu_custom_call.1} parent=5 // pred_region
        %s164 = ssub.s32 %s14, 1
        // Predicated region
        $region13: #{tpu_custom_call.1} parent=11 // pred_check
          %p165 = pneg %p61
        $region14: #{tpu_custom_call.1} parent=11 // pred_check_branch
          %167 = sbr.rel (%p165) target = $region16
        $region15: #{tpu_custom_call.1} parent=11 // pred_region
          _
        $region16: #{tpu_custom_call.1} parent=11 // pred_fallthru
          _
        // Predicated region
        $region17: #{tpu_custom_call.1} parent=11 // pred_check
          %p168 = pneg %p82
        $region18: #{tpu_custom_call.1} parent=11 // pred_check_branch
          %170 = sbr.rel (%p168) target = $region20
        $region19: #{tpu_custom_call.1} parent=11 // pred_region
          _
        $region20: #{tpu_custom_call.1} parent=11 // pred_fallthru
          _
        // Predicated region
        $region21: #{tpu_custom_call.1} parent=11 // pred_check
          %p171 = pneg %p103
        $region22: #{tpu_custom_call.1} parent=11 // pred_check_branch
          %173 = sbr.rel (%p171) target = $region24
        $region23: #{tpu_custom_call.1} parent=11 // pred_region
          _
        $region24: #{tpu_custom_call.1} parent=11 // pred_fallthru
          _
        // Predicated region
        $region25: #{tpu_custom_call.1} parent=11 // pred_check
          %p174 = pneg %p124
        $region26: #{tpu_custom_call.1} parent=11 // pred_check_branch
          %176 = sbr.rel (%p174) target = $region28
        $region27: #{tpu_custom_call.1} parent=11 // pred_region
          _
        $region28: #{tpu_custom_call.1} parent=11 // pred_fallthru
          _
      $region12: #{tpu_custom_call.1} parent=5 // pred_fallthru
        _
      %p177 = scmp.lt.s32.totalorder %s14, 2
      // Predicated region
      $region29: #{tpu_custom_call.1} parent=5 // pred_check
        %p178 = pneg %p177
      $region30: #{tpu_custom_call.1} parent=5 // pred_check_branch
        %180 = sbr.rel (%p178) target = $region32
      $region31: #{tpu_custom_call.1} parent=5 // pred_region
        // Predicated region
        $region33: #{tpu_custom_call.1} parent=31 // pred_check
          %p181 = pneg %p34
        $region34: #{tpu_custom_call.1} parent=31 // pred_check_branch
          %183 = sbr.rel (%p181) target = $region36
        $region35: #{tpu_custom_call.1} parent=31 // pred_region
          %p184 = scmp.lt.s32.totalorder %s14, 1
          %s185 = scalar_select %p184, %s14, 1
          %s186 = smul.addr %s185, 4
          %s187 = scalar_lea.vmem %s0, %s186
        $region36: #{tpu_custom_call.1} parent=31 // pred_fallthru
          _
      $region32: #{tpu_custom_call.1} parent=5 // pred_fallthru
        _
      %p188 = scmp.le.s32.totalorder 1, %s14
      %p189 = scmp.lt.s32.totalorder %s14, 3
      %p190 = pnand %p188, %p189
      %p191 = pneg %p190
      // Predicated region
      $region37: #{tpu_custom_call.1} parent=5 // pred_check
        _
      $region38: #{tpu_custom_call.1} parent=5 // pred_check_branch
        %193 = sbr.rel (%p190) target = $region40
      $region39: #{tpu_custom_call.1} parent=5 // pred_region
        %s194 = ssub.s32 %s14, 1
        %p195 = scmp.lt.s32.totalorder %s19, 1
        %s196 = scalar_select %p195, %s19, 1
        %s197 = smul.addr %s196, 4
        %s198 = scalar_lea.vmem %s0, %s197
        %p199 = pneg %p40
        %p200 = pneg %p37
        %p201 = pneg %p61
        %p202 = pneg %p58
        %p203 = pneg %p82
        %p204 = pneg %p79
        %p205 = pneg %p103
        %p206 = pneg %p100
        %p207 = pneg %p124
        %p208 = pneg %p121
        %p209 = pneg %p150
        %p210 = pneg %p147
        %s211 = sand.u32 %s137, 1
        %s212 = scalar_lea.sflag [#allocation3], %s211
        %s213 = sand.u32 %s137, 1
        %s214 = smul.addr %s213, 8
        %s215 = scalar_lea.vmem [#allocation2], %s214
        %p216 = scmp.lt.s32.totalorder %s19, 1
        %s217 = scalar_select %p216, %s19, 1
        %s218 = smul.addr %s217, 4
        %s219 = scalar_lea.vmem %s0, %s218
        %v220 = vld [vmem:[%s219] sm:$0xf]
        %v221 = vunpack.c.l.bf16 %v220
        %v222 = vlaneseq
        %v223 = vand.u32 %v222, 127
        %v224 = vand.u32 %v223, 127
        %vm225 = vcmp.ge.s32.totalorder %v224, 4
        %v226 = vsel %vm225, 1, 0
        %v227 = vcvt.s32.f32 %v226
        %vm228 = vcmp.ge.s32.totalorder %v224, 2
        %v229 = vsel %vm228, 1, 0
        %v230 = vcvt.s32.f32 %v229
        %v231 = vld [vmem:[%s1] sm:$0xff]
        %v232 = vld [vmem:[%s1 + $0x8] sm:$0xff]
        %v233 = vld [vmem:[%s1 + $0x10] sm:$0xff]
        %v234 = vld [vmem:[%s1 + $0x18] sm:$0xff]
        %235 = vrot.lane.b32.xlu0 %v221, 4
        %v236 = vpop.permute.xlu0 %235
        %v237 = vmul.f32 %v236, %v227
        %238 = vrot.lane.b32.xlu0 %v221, 2
        %v239 = vpop.permute.xlu0 %238
        %v240 = vmul.f32 %v239, %v230
        %v241 = vld [vmem:[%s2] sm:$0xff]
        %v242 = vld [vmem:[%s2 + $0x8] sm:$0xff]
        %v243 = vld [vmem:[%s2 + $0x10] sm:$0xff]
        %v244 = vld [vmem:[%s2 + $0x18] sm:$0xff]
        %246 = vset.pattern.permute.xlu0 0
        %247 = vperm.xlu0 %246, %v241
        %v248 = vpop.permute.xlu0 %247
        %251 = vset.pattern.permute.xlu0 0
        %252 = vperm.xlu0 %251, %v242
        %v253 = vpop.permute.xlu0 %252
        %256 = vset.pattern.permute.xlu0 0
        %257 = vperm.xlu0 %256, %v243
        %v258 = vpop.permute.xlu0 %257
        %261 = vset.pattern.permute.xlu0 0
        %262 = vperm.xlu0 %261, %v244
        %v263 = vpop.permute.xlu0 %262
        %vm265 = vcmask 195584
        %v267 = vsel %vm265, %v231, 0
        %v270 = vsel %vm265, %v232, 0
        %v273 = vsel %vm265, %v233, 0
        %v276 = vsel %vm265, %v234, 0
        %278 = vmatprep.subr.mxu0 0.0
        %279 = vmatpush1.msra.mxu0 %v237
        %280 = vmatprep.subr.mxu0 0.0
        %281 = vmatpush1.msra.mxu0 %v240
        %282 = vmatprep.subr.mxu0 0.0
        %283 = vmatpush1.msra.mxu0 %v221
        %284 = vmatprep.subr.mxu0 0.0
        %285 = vmatpush1.msra.mxu0 0.0
        %286 = vmatprep.subr.mxu0 0.0
        %287 = vmatpush1.msra.mxu0 0.0
        %288 = vmatprep.subr.mxu0 0.0
        %289 = vmatpush1.msra.mxu0 0.0
        %290 = vmatprep.subr.mxu0 0.0
        %291 = vmatpush1.msra.mxu0 0.0
        %292 = vmatprep.subr.mxu0 0.0
        %293 = vmatpush1.msra.mxu0 0.0
        %294 = vmatprep.subr.mxu0 0.0
        %295 = vmatpush1.msra.mxu0 0.0
        %296 = vmatprep.subr.mxu0 0.0
        %297 = vmatpush1.msra.mxu0 0.0
        %298 = vmatprep.subr.mxu0 0.0
        %299 = vmatpush1.msra.mxu0 0.0
        %300 = vmatprep.subr.mxu0 0.0
        %301 = vmatpush1.msra.mxu0 0.0
        %302 = vmatprep.subr.mxu0 0.0
        %303 = vmatpush1.msra.mxu0 0.0
        %304 = vmatprep.subr.mxu0 0.0
        %305 = vmatpush1.msra.mxu0 0.0
        %306 = vmatprep.subr.mxu0 0.0
        %307 = vmatpush1.msra.mxu0 0.0
        %308 = vmatprep.subr.mxu0 0.0
        %309 = vmatpush1.msra.mxu0 0.0
        %310 = vmatprep.subr.mxu0 0.0
        %311 = vmatpush1.msra.mxu0 0.0
        %312 = vmatprep.subr.mxu0 0.0
        %313 = vmatpush1.msra.mxu0 0.0
        %314 = vmatprep.subr.mxu0 0.0
        %315 = vmatpush1.msra.mxu0 0.0
        %316 = vmatprep.subr.mxu0 0.0
        %317 = vmatpush1.msra.mxu0 0.0
        %318 = vmatprep.subr.mxu0 0.0
        %319 = vmatpush1.msra.mxu0 0.0
        %320 = vmatprep.subr.mxu0 0.0
        %321 = vmatpush1.msra.mxu0 0.0
        %322 = vmatprep.subr.mxu0 0.0
        %323 = vmatpush1.msra.mxu0 0.0
        %324 = vmatprep.subr.mxu0 0.0
        %325 = vmatpush1.msra.mxu0 0.0
        %326 = vmatprep.subr.mxu0 0.0
        %327 = vmatpush1.msra.mxu0 0.0
        %328 = vmatprep.subr.mxu0 0.0
        %329 = vmatpush1.msra.mxu0 0.0
        %330 = vmatprep.subr.mxu0 0.0
        %331 = vmatpush1.msra.mxu0 0.0
        %332 = vmatprep.subr.mxu0 0.0
        %333 = vmatpush1.msra.mxu0 0.0
        %334 = vmatprep.subr.mxu0 0.0
        %335 = vmatpush1.msra.mxu0 0.0
        %336 = vmatprep.subr.mxu0 0.0
        %337 = vmatpush1.msra.mxu0 0.0
        %338 = vmatprep.subr.mxu0 0.0
        %339 = vmatpush1.msra.mxu0 0.0
        %340 = vmatprep.subr.mxu0 0.0
        %341 = vmatpush1.msra.mxu0 0.0
        %342 = vmatprep.mubr.f32.mxu0 0.0
        %343 = vmatmul.mubr.f32.gmra.mrb[0].mxu0 %v267
        %v344 = vpop.f32.mrb[0].mxu0
        %v345 = vadd.f32 %v248, %v344
        %v346 = vpop.f32.mrb[0].mxu0
        %347 = vmatprep.mubr.f32.mxu0 0.0
        %348 = vmatmul.mubr.f32.gmra.mrb[0].mxu0 %v270
        %v349 = vpop.f32.mrb[0].mxu0
        %v350 = vadd.f32 %v253, %v349
        %v351 = vpop.f32.mrb[0].mxu0
        %352 = vmatprep.mubr.f32.mxu0 0.0
        %353 = vmatmul.mubr.f32.gmra.mrb[0].mxu0 %v273
        %v354 = vpop.f32.mrb[0].mxu0
        %v355 = vadd.f32 %v258, %v354
        %v356 = vpop.f32.mrb[0].mxu0
        %357 = vmatprep.mubr.f32.mxu0 0.0
        %358 = vmatmul.mubr.f32.gmra.mrb[0].mxu0 %v276
        %v359 = vpop.f32.mrb[0].mxu0
        %v360 = vadd.f32 %v263, %v359
        %v361 = vpop.f32.mrb[0].mxu0
        %362 = vdwg.mxu0
        %v363 = vmul.f32 %v345, 0.5
        %v364 = vmul.f32 %v350, 0.5
        %v365 = vtanh.pop %v363
        %v366 = vtanh.pop %v364
        %v367 = vadd.f32 %v365, 1.0
        %v368 = vadd.f32 %v366, 1.0
        %v369 = vmul.f32 %v363, %v367
        %v370 = vmul.f32 %v364, %v368
        %v371 = vld [vmem:[%s3] sm:$0xff]
        %v372 = vld [vmem:[%s3 + $0x8] sm:$0xff]
        %373 = vrot.lane.b32.xlu0 %v369, 4
        %v374 = vpop.permute.xlu0 %373
        %375 = vrot.lane.b32.xlu0 %v370, 4
        %v376 = vpop.permute.xlu0 %375
        %v377 = vmul.f32 %v374, %v227
        %v378 = vmul.f32 %v376, %v227
        %379 = vrot.lane.b32.xlu0 %v369, 2
        %v380 = vpop.permute.xlu0 %379
        %381 = vrot.lane.b32.xlu0 %v370, 2
        %v382 = vpop.permute.xlu0 %381
        %v383 = vmul.f32 %v380, %v230
        %v384 = vmul.f32 %v382, %v230
        %v385 = vld [vmem:[%s4] sm:$0xff]
        %v386 = vld [vmem:[%s4 + $0x8] sm:$0xff]
        %388 = vset.pattern.permute.xlu0 0
        %389 = vperm.xlu0 %388, %v385
        %v390 = vpop.permute.xlu0 %389
        %393 = vset.pattern.permute.xlu0 0
        %394 = vperm.xlu0 %393, %v386
        %v395 = vpop.permute.xlu0 %394
        %vm397 = vcmask 392192
        %v399 = vsel %vm397, %v371, 0
        %v402 = vsel %vm397, %v372, 0
        %404 = vmatprep.subr.mxu0 0.0
        %405 = vmatpush1.msra.mxu0 %v377
        %406 = vmatprep.subr.mxu0 0.0
        %407 = vmatpush1.msra.mxu0 %v378
        %408 = vmatprep.subr.mxu0 0.0
        %409 = vmatpush1.msra.mxu0 %v383
        %410 = vmatprep.subr.mxu0 0.0
        %411 = vmatpush1.msra.mxu0 %v384
        %412 = vmatprep.subr.mxu0 0.0
        %413 = vmatpush1.msra.mxu0 %v369
        %414 = vmatprep.subr.mxu0 0.0
        %415 = vmatpush1.msra.mxu0 %v370
        %416 = vmatprep.subr.mxu0 0.0
        %417 = vmatpush1.msra.mxu0 0.0
        %418 = vmatprep.subr.mxu0 0.0
        %419 = vmatpush1.msra.mxu0 0.0
        %420 = vmatprep.subr.mxu0 0.0
        %421 = vmatpush1.msra.mxu0 0.0
        %422 = vmatprep.subr.mxu0 0.0
        %423 = vmatpush1.msra.mxu0 0.0
        %424 = vmatprep.subr.mxu0 0.0
        %425 = vmatpush1.msra.mxu0 0.0
        %426 = vmatprep.subr.mxu0 0.0
        %427 = vmatpush1.msra.mxu0 0.0
        %428 = vmatprep.subr.mxu0 0.0
        %429 = vmatpush1.msra.mxu0 0.0
        %430 = vmatprep.subr.mxu0 0.0
        %431 = vmatpush1.msra.mxu0 0.0
        %432 = vmatprep.subr.mxu0 0.0
        %433 = vmatpush1.msra.mxu0 0.0
        %434 = vmatprep.subr.mxu0 0.0
        %435 = vmatpush1.msra.mxu0 0.0
        %436 = vmatprep.subr.mxu0 0.0
        %437 = vmatpush1.msra.mxu0 0.0
        %438 = vmatprep.subr.mxu0 0.0
        %439 = vmatpush1.msra.mxu0 0.0
        %440 = vmatprep.subr.mxu0 0.0
        %441 = vmatpush1.msra.mxu0 0.0
        %442 = vmatprep.subr.mxu0 0.0
        %443 = vmatpush1.msra.mxu0 0.0
        %444 = vmatprep.subr.mxu0 0.0
        %445 = vmatpush1.msra.mxu0 0.0
        %446 = vmatprep.subr.mxu0 0.0
        %447 = vmatpush1.msra.mxu0 0.0
        %448 = vmatprep.subr.mxu0 0.0
        %449 = vmatpush1.msra.mxu0 0.0
        %450 = vmatprep.subr.mxu0 0.0
        %451 = vmatpush1.msra.mxu0 0.0
        %452 = vmatprep.subr.mxu0 0.0
        %453 = vmatpush1.msra.mxu0 0.0
        %454 = vmatprep.subr.mxu0 0.0
        %455 = vmatpush1.msra.mxu0 0.0
        %456 = vmatprep.subr.mxu0 0.0
        %457 = vmatpush1.msra.mxu0 0.0
        %458 = vmatprep.subr.mxu0 0.0
        %459 = vmatpush1.msra.mxu0 0.0
        %460 = vmatprep.subr.mxu0 0.0
        %461 = vmatpush1.msra.mxu0 0.0
        %462 = vmatprep.subr.mxu0 0.0
        %463 = vmatpush1.msra.mxu0 0.0
        %464 = vmatprep.subr.mxu0 0.0
        %465 = vmatpush1.msra.mxu0 0.0
        %466 = vmatprep.subr.mxu0 0.0
        %467 = vmatpush1.msra.mxu0 0.0
        %468 = vmatprep.mubr.f32.mxu0 0.0
        %469 = vmatmul.mubr.f32.gmra.mrb[0].mxu0 %v399
        %v470 = vpop.f32.mrb[0].mxu0
        %v471 = vadd.f32 %v390, %v470
        %v472 = vpop.f32.mrb[0].mxu0
        %473 = vmatprep.mubr.f32.mxu0 0.0
        %474 = vmatmul.mubr.f32.gmra.mrb[0].mxu0 %v402
        %v475 = vpop.f32.mrb[0].mxu0
        %v476 = vadd.f32 %v395, %v475
        %v477 = vpop.f32.mrb[0].mxu0
        %478 = vdwg.mxu0
        %v479 = vmul.f32 %v471, 0.5
        %v480 = vmul.f32 %v476, 0.5
        %v481 = vtanh.pop %v479
        %v482 = vtanh.pop %v480
        %v483 = vadd.f32 %v481, 1.0
        %v484 = vadd.f32 %v482, 1.0
        %v485 = vmul.f32 %v479, %v483
        %v486 = vmul.f32 %v480, %v484
        %v487 = vadd.f32 %v485, %v355
        %v488 = vadd.f32 %v486, %v360
        %v489 = vpack.c.bf16 %v488, %v487
        %v491 = vunpack.c.l.b16 %v489
        %v492 = vunpack.c.h.b16 %v489
        %v493 = vpack.c.b16 %v491, %v491
        %v494 = vpack.c.b16 %v492, %v492
        %497 = vst [vmem:[%s215] sm:$0xf] %v493
        %498 = vst [vmem:[%s215 + $0x4] sm:$0xf] %v494
        %s499 = sand.u32 %s137, 1
        %s500 = scalar_lea.sflag [#allocation3], %s499
        %s501 = sand.u32 %s137, 1
        %s502 = smul.addr %s501, 8
        %s503 = scalar_lea.vmem [#allocation2], %s502
        // Predicated region
        $region41: #{tpu_custom_call.1} parent=39 // pred_check
          %p504 = pneg %p147
        $region42: #{tpu_custom_call.1} parent=39 // pred_check_branch
          %506 = sbr.rel (%p504) target = $region44
        $region43: #{tpu_custom_call.1} parent=39 // pred_region
          %s508 = ssub.s32 128, 128
          %509 = vsyncadd %s500, %s508
          %s510 = smul.addr %s19, 64
          %s511 = scalar_lea.hbm %s5, %s510
          %s512 = sshll.u32 %s503, 4
          %s513 = int_to_ptr.vmem [resolvable:$true] %s512
          %518 = dma.vmem_to_hbm [thread:$0]  %s513, 128, %s511, %s500, 64, 128, 4
        $region44: #{tpu_custom_call.1} parent=39 // pred_fallthru
          _
      $region40: #{tpu_custom_call.1} parent=5 // pred_fallthru
        _
      %p519 = scmp.le.s32.totalorder 2, %s14
      // Predicated region
      $region45: #{tpu_custom_call.1} parent=5 // pred_check
        %p520 = pneg %p519
      $region46: #{tpu_custom_call.1} parent=5 // pred_check_branch
        %522 = sbr.rel (%p520) target = $region48
      $region47: #{tpu_custom_call.1} parent=5 // pred_region
        %s523 = ssub.s32 %s14, 2
        // Predicated region
        $region49: #{tpu_custom_call.1} parent=47 // pred_check
          %p524 = pneg %p153
        $region50: #{tpu_custom_call.1} parent=47 // pred_check_branch
          %526 = sbr.rel (%p524) target = $region52
        $region51: #{tpu_custom_call.1} parent=47 // pred_region
          %s527 = sand.u32 %s138, 1
          %s528 = scalar_lea.sflag [#allocation3], %s527
          %s529 = sand.u32 %s138, 1
          %s530 = smul.addr %s529, 8
          %s531 = scalar_lea.vmem [#allocation2], %s530
          %532 = dma.done %s528, 128
        $region52: #{tpu_custom_call.1} parent=47 // pred_fallthru
          _
      $region48: #{tpu_custom_call.1} parent=5 // pred_fallthru
        _
    $region6: #{tpu_custom_call.1} parent=1 // loop_footer
      %s18 = sadd.s32 1, %s14
    $region7: #{tpu_custom_call.1} parent=1 // loop_footer_branch
      %13 = sbr.rel target = $region3
    $region8: #{tpu_custom_call.1} parent=1 // loop_exit
      _
    %533 = vsyncpa [#allocation3], 1
    %s534 = scalar_lea.sflag [#allocation3], 1
    %535 = vsyncpa %s534, 1

</llo_original>
